<compile_context>
chip_gen: v7x
topology: tpu7x:2x2x1
jax: 0.10.0
libtpu: 0.0.40
codegen_flags: <defaults>
</compile_context>

<pallas_src>
import functools

import jax
import jax.numpy as jnp
from jax.experimental import pallas as pl
from jax.experimental.pallas import tpu as pltpu

_LANE = 128
_SUBLANE = 8


def _round_up(x, m):
    return (x + m - 1) // m * m


def _vmem_limit_bytes():
    """Generation-aware VMEM request: <= 3/4 of physical VMEM, capped at 64 MiB."""
    cap = None
    try:
        cap = getattr(pltpu.get_tpu_info(), "vmem_capacity_bytes", None)
    except Exception:
        cap = None
    limit = 64 * 1024 * 1024
    if cap:
        limit = min(limit, int(cap) * 3 // 4)
    return limit


def _has_bf16_vpu():
    """v6e/v7x have bf16 VALUs; v5e and older do not. Either path is numerically OK."""
    try:
        kind = jax.devices()[0].device_kind.lower()
    except Exception:
        return False
    return not any(v in kind for v in ("v2", "v3", "v4", "v5"))


_VMEM_LIMIT = _vmem_limit_bytes()
_BF16_ELEMENTWISE = _has_bf16_vpu()


def fcnet_kernel(x_ref, w1_ref, b1_ref, w2_ref, b2_ref, w3_ref, b3_ref, o_ref,
                 *, bf16_elementwise):
    # x arrives as f32; cast the (block_b, D) tile to bf16 in VMEM (cheap VPU op,
    # avoids an extra wrapper-side HBM pass over x).
    x = x_ref[...].astype(jnp.bfloat16)

    # Layer 1: Linear(D -> 512) + ReLU.  MXU accumulates in f32.
    h1 = jnp.dot(x, w1_ref[...], preferred_element_type=jnp.float32)
    if bf16_elementwise:
        h1 = jnp.maximum(h1.astype(jnp.bfloat16) + b1_ref[...].astype(jnp.bfloat16), 0.0)
    else:
        h1 = jnp.maximum(h1 + b1_ref[...], 0.0).astype(jnp.bfloat16)

    # Layer 2: Linear(512 -> 256) + ReLU.
    h2 = jnp.dot(h1, w2_ref[...], preferred_element_type=jnp.float32)
    if bf16_elementwise:
        h2 = jnp.maximum(h2.astype(jnp.bfloat16) + b2_ref[...].astype(jnp.bfloat16), 0.0)
    else:
        h2 = jnp.maximum(h2 + b2_ref[...], 0.0).astype(jnp.bfloat16)

    # Layer 3: Linear(256 -> C_pad); narrow, bf16 writeback (output traffic dominates).
    out = jnp.dot(h2, w3_ref[...], preferred_element_type=jnp.float32) + b3_ref[...]
    o_ref[...] = out.astype(o_ref.dtype)


def prepare_fcnet_params(params, out_pad_to=_SUBLANE):
    """One-time conversion (do NOT call per forward): bf16 weights (in, out) layout,
    f32 biases, final layer zero-padded to `out_pad_to` columns (8 = narrow output,
    128 = lane-dense alternative for benchmarking)."""
    w3, b3 = params["w3"], params["b3"]
    C = w3.shape[1]
    C_pad = _round_up(max(C, out_pad_to), out_pad_to)
    w3p = jnp.pad(w3, ((0, 0), (0, C_pad - C)))
    b3p = jnp.pad(b3, ((0, 0), (0, C_pad - C)))
    return {
        "w1": params["w1"].astype(jnp.bfloat16),
        "b1": params["b1"].astype(jnp.float32),
        "w2": params["w2"].astype(jnp.bfloat16),
        "b2": params["b2"].astype(jnp.float32),
        "w3": w3p.astype(jnp.bfloat16),
        "b3": b3p.astype(jnp.float32),
    }


@functools.partial(jax.jit, static_argnames=("num_classes", "block_b"))
def fcnet_forward(x, prepared, *, num_classes, block_b=1024):
    """x: (B, input_dim) f32. `prepared` from prepare_fcnet_params().
    Returns (B, num_classes) bfloat16 logits (callers wanting f32 should cast)."""
    w1, b1 = prepared["w1"], prepared["b1"]
    w2, b2 = prepared["w2"], prepared["b2"]
    w3, b3 = prepared["w3"], prepared["b3"]

    B, D = x.shape
    H1 = w1.shape[1]
    H2 = w2.shape[1]
    C_pad = w3.shape[1]

    # Balanced batch tiles: >=2 grid steps (both TCs on v7x get work), tiles are
    # multiples of 8 rows, and padding is bounded to <8 rows per tile.
    n_tiles = max(pl.cdiv(B, block_b), 2 if B >= 2 * _SUBLANE else 1)
    eff_block = _round_up(pl.cdiv(B, n_tiles), _SUBLANE)
    B_pad = n_tiles * eff_block
    xp = x if B_pad == B else jnp.pad(x, ((0, B_pad - B), (0, 0)))

    # Grid-invariant weight/bias blocks: full arrays resident in VMEM.
    def full(r, c):
        return pl.BlockSpec((r, c), lambda i: (0, 0))

    flops = 2 * B_pad * (D * H1 + H1 * H2 + H2 * C_pad)
    bytes_accessed = (
        xp.size * 4                                  # f32 x read
        + (w1.size + w2.size + w3.size) * 2          # bf16 weights
        + (b1.size + b2.size + b3.size) * 4          # f32 biases
        + B_pad * C_pad * 2                          # bf16 output write
    )
    cost = pl.CostEstimate(flops=flops, transcendentals=0,
                           bytes_accessed=bytes_accessed)

    kernel = functools.partial(fcnet_kernel, bf16_elementwise=_BF16_ELEMENTWISE)

    out = pl.pallas_call(
        kernel,
        out_shape=jax.ShapeDtypeStruct((B_pad, C_pad), jnp.bfloat16),
        grid_spec=pltpu.PrefetchScalarGridSpec(
            num_scalar_prefetch=0,
            grid=(n_tiles,),
            in_specs=[
                pl.BlockSpec((eff_block, D), lambda i: (i, 0)),  # x tile (batch-tiled)
                full(D, H1), full(1, H1),                        # layer 1
                full(H1, H2), full(1, H2),                       # layer 2
                full(H2, C_pad), full(1, C_pad),                 # layer 3 (padded)
            ],
            out_specs=pl.BlockSpec((eff_block, C_pad), lambda i: (i, 0)),
        ),
        compiler_params=pltpu.CompilerParams(
            dimension_semantics=("parallel",),   # batch tiles split across TCs on v7x
            vmem_limit_bytes=_VMEM_LIMIT,
        ),
        cost_estimate=cost,
    )(xp, w1, b1, w2, b2, w3, b3)

    # Drop batch padding and the zero-padded output columns.
    return out[:B, :num_classes]


def init_fcnet_params(key, input_dim, num_classes=7):
    """Deterministic PyTorch-style init; weights stored transposed as (in, out)."""
    def linear_init(k, fan_in, fan_out):
        kw, kb = jax.random.split(k)
        bound = 1.0 / jnp.sqrt(fan_in)
        w = jax.random.uniform(kw, (fan_in, fan_out), jnp.float32, -bound, bound)
        b = jax.random.uniform(kb, (1, fan_out), jnp.float32, -bound, bound)
        return w, b

    k1, k2, k3 = jax.random.split(key, 3)
    w1, b1 = linear_init(k1, input_dim, 512)
    w2, b2 = linear_init(k2, 512, 256)
    w3, b3 = linear_init(k3, 256, num_classes)
    return {"w1": w1, "b1": b1, "w2": w2, "b2": b2, "w3": w3, "b3": b3}


def fcnet_reference(x, params):
    """Pure-JAX f32 reference (eval-mode dropout = identity)."""
    h1 = jnp.maximum(x @ params["w1"] + params["b1"], 0.0)
    h2 = jnp.maximum(h1 @ params["w2"] + params["b2"], 0.0)
    return h2 @ params["w3"] + params["b3"]


if __name__ == "__main__":
    key = jax.random.PRNGKey(0)
    kx, kp = jax.random.split(key)

    batch, input_dim, num_classes = 16, 32, 7
    x = jax.random.normal(kx, (batch, input_dim), dtype=jnp.float32)
    params = init_fcnet_params(kp, input_dim, num_classes)
    prepared = prepare_fcnet_params(params)   # one-time weight conversion / padding

    out = fcnet_forward(x, prepared, num_classes=num_classes)
    out = jax.block_until_ready(out)

    ref = fcnet_reference(x, params)
    assert out.shape == (batch, num_classes), out.shape
    # bf16 matmul operands / bf16 output (f32 MXU accumulation) vs f32 reference.
    err = float(jnp.max(jnp.abs(out.astype(jnp.float32) - ref)))
    assert err < 5e-2, f"mismatch vs reference: max abs err = {err}"

    print("KERNEL_OK")
</pallas_src>

<mosaic_0001>
module attributes {stable_mosaic.version = 11 : i64} {
  func.func @fcnet_kernel(%arg0: i32, %arg1: memref<8x32xf32, #tpu.memory_space<vmem>>, %arg2: memref<32x512xbf16, #tpu.memory_space<vmem>>, %arg3: memref<1x512xf32, #tpu.memory_space<vmem>>, %arg4: memref<512x256xbf16, #tpu.memory_space<vmem>>, %arg5: memref<1x256xf32, #tpu.memory_space<vmem>>, %arg6: memref<256x8xbf16, #tpu.memory_space<vmem>>, %arg7: memref<1x8xf32, #tpu.memory_space<vmem>>, %arg8: memref<8x8xbf16, #tpu.memory_space<vmem>>) attributes {dimension_semantics = [#tpu.dimension_semantics<parallel>], iteration_bounds = array<i64: 2>, scalar_prefetch = 0 : i64, scratch_operands = 0 : i64, tpu.core_type = #tpu.core_type<tc>, window_params = [{transform_indices = @transform_0, window_bounds = array<i64: 8, 32>}, {pipeline_mode = #tpu.pipeline_mode<synchronous>, transform_indices = @transform_1, window_bounds = array<i64: 32, 512>}, {pipeline_mode = #tpu.pipeline_mode<synchronous>, transform_indices = @transform_2, window_bounds = array<i64: 1, 512>}, {pipeline_mode = #tpu.pipeline_mode<synchronous>, transform_indices = @transform_3, window_bounds = array<i64: 512, 256>}, {pipeline_mode = #tpu.pipeline_mode<synchronous>, transform_indices = @transform_4, window_bounds = array<i64: 1, 256>}, {pipeline_mode = #tpu.pipeline_mode<synchronous>, transform_indices = @transform_5, window_bounds = array<i64: 256, 8>}, {pipeline_mode = #tpu.pipeline_mode<synchronous>, transform_indices = @transform_6, window_bounds = array<i64: 1, 8>}, {transform_indices = @transform_7, window_bounds = array<i64: 8, 8>}]} {
    %c0 = arith.constant 0 : index
    %c0_0 = arith.constant 0 : index
    %0 = vector.load %arg1[%c0, %c0_0] : memref<8x32xf32, #tpu.memory_space<vmem>>, vector<8x32xf32>
    %1 = arith.truncf %0 : vector<8x32xf32> to vector<8x32xbf16>
    %c0_1 = arith.constant 0 : index
    %c0_2 = arith.constant 0 : index
    %2 = vector.load %arg2[%c0_1, %c0_2] : memref<32x512xbf16, #tpu.memory_space<vmem>>, vector<32x512xbf16>
    %cst = arith.constant dense<0.000000e+00> : vector<8x512xf32>
    %3 = tpu.matmul %1, %2, %cst {dimension_numbers = #tpu.dot_dimension_numbers<[1], [0], [0], [1], [0, 0, 1, 1], [], []>} : vector<8x32xbf16>, vector<32x512xbf16>, vector<8x512xf32> -> vector<8x512xf32>
    %4 = arith.truncf %3 : vector<8x512xf32> to vector<8x512xbf16>
    %c0_3 = arith.constant 0 : index
    %c0_4 = arith.constant 0 : index
    %5 = vector.load %arg3[%c0_3, %c0_4] : memref<1x512xf32, #tpu.memory_space<vmem>>, vector<1x512xf32>
    %6 = arith.truncf %5 : vector<1x512xf32> to vector<1x512xbf16>
    %7 = vector.broadcast %6 : vector<1x512xbf16> to vector<8x512xbf16>
    %8 = arith.addf %4, %7 : vector<8x512xbf16>
    %cst_5 = arith.constant 0.000000e+00 : bf16
    %9 = vector.broadcast %cst_5 : bf16 to vector<8x512xbf16>
    %10 = arith.maximumf %8, %9 : vector<8x512xbf16>
    %c0_6 = arith.constant 0 : index
    %c0_7 = arith.constant 0 : index
    %11 = vector.load %arg4[%c0_6, %c0_7] : memref<512x256xbf16, #tpu.memory_space<vmem>>, vector<512x256xbf16>
    %cst_8 = arith.constant dense<0.000000e+00> : vector<8x256xf32>
    %12 = tpu.matmul %10, %11, %cst_8 {dimension_numbers = #tpu.dot_dimension_numbers<[1], [0], [0], [1], [0, 0, 1, 1], [], []>} : vector<8x512xbf16>, vector<512x256xbf16>, vector<8x256xf32> -> vector<8x256xf32>
    %13 = arith.truncf %12 : vector<8x256xf32> to vector<8x256xbf16>
    %c0_9 = arith.constant 0 : index
    %c0_10 = arith.constant 0 : index
    %14 = vector.load %arg5[%c0_9, %c0_10] : memref<1x256xf32, #tpu.memory_space<vmem>>, vector<1x256xf32>
    %15 = arith.truncf %14 : vector<1x256xf32> to vector<1x256xbf16>
    %16 = vector.broadcast %15 : vector<1x256xbf16> to vector<8x256xbf16>
    %17 = arith.addf %13, %16 : vector<8x256xbf16>
    %cst_11 = arith.constant 0.000000e+00 : bf16
    %18 = vector.broadcast %cst_11 : bf16 to vector<8x256xbf16>
    %19 = arith.maximumf %17, %18 : vector<8x256xbf16>
    %c0_12 = arith.constant 0 : index
    %c0_13 = arith.constant 0 : index
    %20 = vector.load %arg6[%c0_12, %c0_13] : memref<256x8xbf16, #tpu.memory_space<vmem>>, vector<256x8xbf16>
    %cst_14 = arith.constant dense<0.000000e+00> : vector<8x8xf32>
    %21 = tpu.matmul %19, %20, %cst_14 {dimension_numbers = #tpu.dot_dimension_numbers<[1], [0], [0], [1], [0, 0, 1, 1], [], []>} : vector<8x256xbf16>, vector<256x8xbf16>, vector<8x8xf32> -> vector<8x8xf32>
    %c0_15 = arith.constant 0 : index
    %c0_16 = arith.constant 0 : index
    %22 = vector.load %arg7[%c0_15, %c0_16] : memref<1x8xf32, #tpu.memory_space<vmem>>, vector<1x8xf32>
    %23 = vector.broadcast %22 : vector<1x8xf32> to vector<8x8xf32>
    %24 = arith.addf %21, %23 : vector<8x8xf32>
    %25 = arith.truncf %24 : vector<8x8xf32> to vector<8x8xbf16>
    %c0_17 = arith.constant 0 : index
    %c0_18 = arith.constant 0 : index
    %26 = vector.load %arg8[%c0_17, %c0_18] : memref<8x8xbf16, #tpu.memory_space<vmem>>, vector<8x8xbf16>
    tpu.vector_store %arg8[%c0_17, %c0_18], %25 {strides = array<i32>} : memref<8x8xbf16, #tpu.memory_space<vmem>>, vector<8x8xbf16>,
    return
  }
  func.func @transform_0(%arg0: i32) -> (i32, i32) {
    %c0_i32 = arith.constant 0 : i32
    %c0_i32_0 = arith.constant 0 : i32
    return %arg0, %c0_i32 : i32, i32
  }
  func.func @transform_1(%arg0: i32) -> (i32, i32) {
    %c0_i32 = arith.constant 0 : i32
    %c0_i32_0 = arith.constant 0 : i32
    %c0_i32_1 = arith.constant 0 : i32
    return %c0_i32, %c0_i32_0 : i32, i32
  }
  func.func @transform_2(%arg0: i32) -> (i32, i32) {
    %c0_i32 = arith.constant 0 : i32
    %c0_i32_0 = arith.constant 0 : i32
    %c0_i32_1 = arith.constant 0 : i32
    return %c0_i32, %c0_i32_0 : i32, i32
  }
  func.func @transform_3(%arg0: i32) -> (i32, i32) {
    %c0_i32 = arith.constant 0 : i32
    %c0_i32_0 = arith.constant 0 : i32
    %c0_i32_1 = arith.constant 0 : i32
    return %c0_i32, %c0_i32_0 : i32, i32
  }
  func.func @transform_4(%arg0: i32) -> (i32, i32) {
    %c0_i32 = arith.constant 0 : i32
    %c0_i32_0 = arith.constant 0 : i32
    %c0_i32_1 = arith.constant 0 : i32
    return %c0_i32, %c0_i32_0 : i32, i32
  }
  func.func @transform_5(%arg0: i32) -> (i32, i32) {
    %c0_i32 = arith.constant 0 : i32
    %c0_i32_0 = arith.constant 0 : i32
    %c0_i32_1 = arith.constant 0 : i32
    return %c0_i32, %c0_i32_0 : i32, i32
  }
  func.func @transform_6(%arg0: i32) -> (i32, i32) {
    %c0_i32 = arith.constant 0 : i32
    %c0_i32_0 = arith.constant 0 : i32
    %c0_i32_1 = arith.constant 0 : i32
    return %c0_i32, %c0_i32_0 : i32, i32
  }
  func.func @transform_7(%arg0: i32) -> (i32, i32) {
    %c0_i32 = arith.constant 0 : i32
    %c0_i32_0 = arith.constant 0 : i32
    return %arg0, %c0_i32 : i32, i32
  }
}

</mosaic_0001>

<llo_original>
// kernel: fcnet_forward.1
$region0: #{fcnet_forward.1}
  #allocation0 [shape = 'u32[]', space=smem, size = 0x4, offset = 0x4, fixed_abs, tag = 'smem constant byte address 0x4 - core index']
  #allocation1 [shape = 'u32[144,128]{1,0:T(1,128)}', space=vmem, size = 0x12000, scoped, tag = 'internal scratch']
  %s0 = inlined_call_operand.hbm [shape: f32[16,32], index: 0, kind: input, shape index: {}]
  %s1 = inlined_call_operand.hbm [shape: bf16[32,512], index: 1, kind: input, shape index: {}]
  %s2 = inlined_call_operand.hbm [shape: f32[1,512], index: 2, kind: input, shape index: {}]
  %s3 = inlined_call_operand.hbm [shape: bf16[512,256], index: 3, kind: input, shape index: {}]
  %s4 = inlined_call_operand.hbm [shape: f32[1,256], index: 4, kind: input, shape index: {}]
  %s5 = inlined_call_operand.hbm [shape: bf16[256,8], index: 5, kind: input, shape index: {}]
  %s6 = inlined_call_operand.hbm [shape: f32[1,8], index: 6, kind: input, shape index: {}]
  %s7 = inlined_call_operand.hbm [shape: bf16[16,8], index: 7, kind: output, shape index: {}]
  %s8 = sld [smem:[#allocation0]]
  $region89: #{fcnet_forward.1} parent=0
    _
  %s10 = ssub.s32 1, %s8
  %s11 = scalar_select 0, %s10, %s8
  $region1: #{fcnet_forward.1} parent=0
    #allocation2 [shape = 'u8[8192]{0}', space=vmem, size = 0x2000, scoped, tag = 'input window, operand 0']
    #allocation3 [shape = 's32[2]{0}', space=sflag, size = 0x8, scoped, tag = 'scoped memory for fcnet_forward.1']
    #allocation4 [shape = 's32[2]{0}', space=sflag, size = 0x8, scoped, tag = 'scoped memory for fcnet_forward.1']
    #allocation5 [shape = 'u8[32768]{0}', space=vmem, size = 0x8000, scoped, tag = 'input window, operand 1, single buffered']
    #allocation6 [shape = 's32[1]{0}', space=sflag, size = 0x4, scoped, tag = 'scoped memory for fcnet_forward.1']
    #allocation7 [shape = 'u8[2048]{0}', space=vmem, size = 0x800, scoped, tag = 'input window, operand 2, single buffered']
    #allocation8 [shape = 'u8[262144]{0}', space=vmem, size = 0x40000, scoped, tag = 'input window, operand 3, single buffered']
    #allocation9 [shape = 's32[1]{0}', space=sflag, size = 0x4, scoped, tag = 'scoped memory for fcnet_forward.1']
    #allocation10 [shape = 'u8[1024]{0}', space=vmem, size = 0x400, scoped, tag = 'input window, operand 4, single buffered']
    #allocation11 [shape = 'u8[65536]{0}', space=vmem, size = 0x10000, scoped, tag = 'input window, operand 5, single buffered']
    #allocation12 [shape = 's32[1]{0}', space=sflag, size = 0x4, scoped, tag = 'scoped memory for fcnet_forward.1']
    #allocation13 [shape = 'u8[512]{0}', space=vmem, size = 0x400, scoped, tag = 'input window, operand 6, single buffered']
    #allocation14 [shape = 'u8[4096]{0}', space=vmem, size = 0x1000, scoped, tag = 'output window, operand 0']
    %12 = vsyncpa [#allocation3], 0
    %s13 = scalar_lea.sflag [#allocation3], 1
    %14 = vsyncpa %s13, 0
    %15 = vsyncpa [#allocation6], 0
    %16 = vsyncpa [#allocation9], 0
    %17 = vsyncpa [#allocation12], 0
    %18 = vsyncpa [#allocation4], 0
    %s19 = scalar_lea.sflag [#allocation4], 1
    %20 = vsyncpa %s19, 0
    loop: start=0, step=1, limit=4
    $region2: #{fcnet_forward.1} parent=1 // loop_pre_header
      _
    $region3: #{fcnet_forward.1} parent=1 // loop_header
      %s22 = sphi 0, %s26
      %p23 = scmp.ge.s32.totalorder %s22, 4
      %s32 = sphi 0, %s34
      %s35 = sphi 0, %s32
      %s36 = sphi 0, %s35
      %s52 = sphi 0, %s36
      %s56 = sphi 0, %s56
      %s58 = sphi 0, %s56
      %s59 = sphi 0, %s58
      %s73 = sphi 0, %s59
      %s77 = sphi 0, %s77
      %s79 = sphi 0, %s77
      %s80 = sphi 0, %s79
      %s94 = sphi 0, %s80
      %s98 = sphi 0, %s98
      %s100 = sphi 0, %s98
      %s101 = sphi 0, %s100
      %s115 = sphi 0, %s101
      %s119 = sphi 0, %s119
      %s121 = sphi 0, %s119
      %s122 = sphi 0, %s121
      %s136 = sphi 0, %s122
      %s140 = sphi 0, %s140
      %s142 = sphi 0, %s140
      %s143 = sphi 0, %s142
      %s157 = sphi 0, %s143
      %s161 = sphi 0, %s161
      %s163 = sphi 0, %s161
      %s164 = sphi 0, %s163
      %s178 = sphi 0, %s164
      %s184 = sphi 0, %s186
      %s187 = sphi 0, %s184
      %s188 = sphi 0, %s187
      %s204 = sphi 0, %s188
    $region4: #{fcnet_forward.1} parent=1 // loop_header_branch
      %25 = sbr.rel (%p23) target = $region8
    $region5: #{fcnet_forward.1} parent=1 // loop_body
      %s27 = ssub.s32 %s22, 1
      %s28 = ssub.s32 %s22, 2
      %s29 = sadd.s32 %s22, 1
      %s30 = ssub.s32 %s22, %s29
      %p31 = scmp.eq.s32.totalorder %s30, 0
      %s33 = sadd.s32 %s32, 1
      %s34 = scalar_select %p31, %s32, %s33
      %p37 = pneg %p31
      %p38 = scmp.eq.s32.totalorder %s22, 1
      %p39 = por %p37, %p38
      %p40 = scmp.ne.s32.totalorder %s32, %s35
      %p41 = scmp.eq.s32.totalorder %s22, 0
      %p42 = por %p40, %p41
      %p43 = scmp.ne.s32.totalorder %s32, %s35
      %p44 = scmp.eq.s32.totalorder %s27, 1
      %p45 = por %p43, %p44
      %p46 = scmp.ne.s32.totalorder %s35, %s36
      %p47 = scmp.eq.s32.totalorder %s27, 0
      %p48 = por %p46, %p47
      %p49 = scmp.ne.s32.totalorder %s35, %s36
      %p50 = scmp.eq.s32.totalorder %s28, 1
      %p51 = por %p49, %p50
      %p53 = scmp.ne.s32.totalorder %s36, %s52
      %p54 = scmp.eq.s32.totalorder %s28, 0
      %p55 = por %p53, %p54
      %s57 = sadd.s32 %s56, 1
      %p60 = scmp.eq.s32.totalorder %s22, 1
      %p61 = scmp.ne.s32.totalorder %s56, %s58
      %p62 = scmp.eq.s32.totalorder %s22, 0
      %p63 = por %p61, %p62
      %p64 = scmp.ne.s32.totalorder %s56, %s58
      %p65 = scmp.eq.s32.totalorder %s27, 1
      %p66 = por %p64, %p65
      %p67 = scmp.ne.s32.totalorder %s58, %s59
      %p68 = scmp.eq.s32.totalorder %s27, 0
      %p69 = por %p67, %p68
      %p70 = scmp.ne.s32.totalorder %s58, %s59
      %p71 = scmp.eq.s32.totalorder %s28, 1
      %p72 = por %p70, %p71
      %p74 = scmp.ne.s32.totalorder %s59, %s73
      %p75 = scmp.eq.s32.totalorder %s28, 0
      %p76 = por %p74, %p75
      %s78 = sadd.s32 %s77, 1
      %p81 = scmp.eq.s32.totalorder %s22, 1
      %p82 = scmp.ne.s32.totalorder %s77, %s79
      %p83 = scmp.eq.s32.totalorder %s22, 0
      %p84 = por %p82, %p83
      %p85 = scmp.ne.s32.totalorder %s77, %s79
      %p86 = scmp.eq.s32.totalorder %s27, 1
      %p87 = por %p85, %p86
      %p88 = scmp.ne.s32.totalorder %s79, %s80
      %p89 = scmp.eq.s32.totalorder %s27, 0
      %p90 = por %p88, %p89
      %p91 = scmp.ne.s32.totalorder %s79, %s80
      %p92 = scmp.eq.s32.totalorder %s28, 1
      %p93 = por %p91, %p92
      %p95 = scmp.ne.s32.totalorder %s80, %s94
      %p96 = scmp.eq.s32.totalorder %s28, 0
      %p97 = por %p95, %p96
      %s99 = sadd.s32 %s98, 1
      %p102 = scmp.eq.s32.totalorder %s22, 1
      %p103 = scmp.ne.s32.totalorder %s98, %s100
      %p104 = scmp.eq.s32.totalorder %s22, 0
      %p105 = por %p103, %p104
      %p106 = scmp.ne.s32.totalorder %s98, %s100
      %p107 = scmp.eq.s32.totalorder %s27, 1
      %p108 = por %p106, %p107
      %p109 = scmp.ne.s32.totalorder %s100, %s101
      %p110 = scmp.eq.s32.totalorder %s27, 0
      %p111 = por %p109, %p110
      %p112 = scmp.ne.s32.totalorder %s100, %s101
      %p113 = scmp.eq.s32.totalorder %s28, 1
      %p114 = por %p112, %p113
      %p116 = scmp.ne.s32.totalorder %s101, %s115
      %p117 = scmp.eq.s32.totalorder %s28, 0
      %p118 = por %p116, %p117
      %s120 = sadd.s32 %s119, 1
      %p123 = scmp.eq.s32.totalorder %s22, 1
      %p124 = scmp.ne.s32.totalorder %s119, %s121
      %p125 = scmp.eq.s32.totalorder %s22, 0
      %p126 = por %p124, %p125
      %p127 = scmp.ne.s32.totalorder %s119, %s121
      %p128 = scmp.eq.s32.totalorder %s27, 1
      %p129 = por %p127, %p128
      %p130 = scmp.ne.s32.totalorder %s121, %s122
      %p131 = scmp.eq.s32.totalorder %s27, 0
      %p132 = por %p130, %p131
      %p133 = scmp.ne.s32.totalorder %s121, %s122
      %p134 = scmp.eq.s32.totalorder %s28, 1
      %p135 = por %p133, %p134
      %p137 = scmp.ne.s32.totalorder %s122, %s136
      %p138 = scmp.eq.s32.totalorder %s28, 0
      %p139 = por %p137, %p138
      %s141 = sadd.s32 %s140, 1
      %p144 = scmp.eq.s32.totalorder %s22, 1
      %p145 = scmp.ne.s32.totalorder %s140, %s142
      %p146 = scmp.eq.s32.totalorder %s22, 0
      %p147 = por %p145, %p146
      %p148 = scmp.ne.s32.totalorder %s140, %s142
      %p149 = scmp.eq.s32.totalorder %s27, 1
      %p150 = por %p148, %p149
      %p151 = scmp.ne.s32.totalorder %s142, %s143
      %p152 = scmp.eq.s32.totalorder %s27, 0
      %p153 = por %p151, %p152
      %p154 = scmp.ne.s32.totalorder %s142, %s143
      %p155 = scmp.eq.s32.totalorder %s28, 1
      %p156 = por %p154, %p155
      %p158 = scmp.ne.s32.totalorder %s143, %s157
      %p159 = scmp.eq.s32.totalorder %s28, 0
      %p160 = por %p158, %p159
      %s162 = sadd.s32 %s161, 1
      %p165 = scmp.eq.s32.totalorder %s22, 1
      %p166 = scmp.ne.s32.totalorder %s161, %s163
      %p167 = scmp.eq.s32.totalorder %s22, 0
      %p168 = por %p166, %p167
      %p169 = scmp.ne.s32.totalorder %s161, %s163
      %p170 = scmp.eq.s32.totalorder %s27, 1
      %p171 = por %p169, %p170
      %p172 = scmp.ne.s32.totalorder %s163, %s164
      %p173 = scmp.eq.s32.totalorder %s27, 0
      %p174 = por %p172, %p173
      %p175 = scmp.ne.s32.totalorder %s163, %s164
      %p176 = scmp.eq.s32.totalorder %s28, 1
      %p177 = por %p175, %p176
      %p179 = scmp.ne.s32.totalorder %s164, %s178
      %p180 = scmp.eq.s32.totalorder %s28, 0
      %p181 = por %p179, %p180
      %s182 = ssub.s32 %s22, %s29
      %p183 = scmp.eq.s32.totalorder %s182, 0
      %s185 = sadd.s32 %s184, 1
      %s186 = scalar_select %p183, %s184, %s185
      %p189 = pneg %p183
      %p190 = scmp.eq.s32.totalorder %s22, 1
      %p191 = por %p189, %p190
      %p192 = scmp.ne.s32.totalorder %s184, %s187
      %p193 = scmp.eq.s32.totalorder %s22, 0
      %p194 = por %p192, %p193
      %p195 = scmp.ne.s32.totalorder %s184, %s187
      %p196 = scmp.eq.s32.totalorder %s27, 1
      %p197 = por %p195, %p196
      %p198 = scmp.ne.s32.totalorder %s187, %s188
      %p199 = scmp.eq.s32.totalorder %s27, 0
      %p200 = por %p198, %p199
      %p201 = scmp.ne.s32.totalorder %s187, %s188
      %p202 = scmp.eq.s32.totalorder %s28, 1
      %p203 = por %p201, %p202
      %p205 = scmp.ne.s32.totalorder %s188, %s204
      %p206 = scmp.eq.s32.totalorder %s28, 0
      %p207 = por %p205, %p206
      %p208 = scmp.le.s32.totalorder 1, %s22
      %p209 = scmp.lt.s32.totalorder %s22, 3
      %p210 = pnand %p208, %p209
      %p211 = pneg %p210
      // Predicated region
      $region9: #{fcnet_forward.1} parent=5 // pred_check
        _
      $region10: #{fcnet_forward.1} parent=5 // pred_check_branch
        %213 = sbr.rel (%p210) target = $region12
      $region11: #{fcnet_forward.1} parent=5 // pred_region
        %s214 = ssub.s32 %s22, 1
        // Predicated region
        $region13: #{fcnet_forward.1} parent=11 // pred_check
          %p215 = pneg %p69
        $region14: #{fcnet_forward.1} parent=11 // pred_check_branch
          %217 = sbr.rel (%p215) target = $region16
        $region15: #{fcnet_forward.1} parent=11 // pred_region
          %s219 = ssub.s32 1024, 1024
          %220 = vsyncadd [#allocation6], %s219
          %s221 = sshll.u32 [#allocation5], 4
          %s222 = int_to_ptr.vmem [resolvable:$true] %s221
          %227 = dma.hbm_to_vmem [thread:$0]  %s1, 1024, %s222, [#allocation6], 256, 256, 16
        $region16: #{fcnet_forward.1} parent=11 // pred_fallthru
          _
        // Predicated region
        $region17: #{fcnet_forward.1} parent=11 // pred_check
          %p228 = pneg %p90
        $region18: #{fcnet_forward.1} parent=11 // pred_check_branch
          %230 = sbr.rel (%p228) target = $region20
        $region19: #{fcnet_forward.1} parent=11 // pred_region
          %s232 = ssub.s32 64, 64
          %233 = vsyncadd [#allocation6], %s232
          %s235 = sshll.u32 [#allocation7], 4
          %s236 = int_to_ptr.vmem [resolvable:$true] %s235
          %238 = dma.hbm_to_vmem [thread:$0]  %s2, 64, %s236, [#allocation6]
        $region20: #{fcnet_forward.1} parent=11 // pred_fallthru
          _
        // Predicated region
        $region21: #{fcnet_forward.1} parent=11 // pred_check
          %p239 = pneg %p111
        $region22: #{fcnet_forward.1} parent=11 // pred_check_branch
          %241 = sbr.rel (%p239) target = $region24
        $region23: #{fcnet_forward.1} parent=11 // pred_region
          %s243 = ssub.s32 8192, 8192
          %244 = vsyncadd [#allocation9], %s243
          %s245 = sshll.u32 [#allocation8], 4
          %s246 = int_to_ptr.vmem [resolvable:$true] %s245
          %251 = dma.hbm_to_vmem [thread:$0]  %s3, 8192, %s246, [#allocation9], 128, 128, 8
        $region24: #{fcnet_forward.1} parent=11 // pred_fallthru
          _
        // Predicated region
        $region25: #{fcnet_forward.1} parent=11 // pred_check
          %p252 = pneg %p132
        $region26: #{fcnet_forward.1} parent=11 // pred_check_branch
          %254 = sbr.rel (%p252) target = $region28
        $region27: #{fcnet_forward.1} parent=11 // pred_region
          %s256 = ssub.s32 32, 32
          %257 = vsyncadd [#allocation9], %s256
          %s259 = sshll.u32 [#allocation10], 4
          %s260 = int_to_ptr.vmem [resolvable:$true] %s259
          %262 = dma.hbm_to_vmem [thread:$0]  %s4, 32, %s260, [#allocation9]
        $region28: #{fcnet_forward.1} parent=11 // pred_fallthru
          _
        // Predicated region
        $region29: #{fcnet_forward.1} parent=11 // pred_check
          %p263 = pneg %p153
        $region30: #{fcnet_forward.1} parent=11 // pred_check_branch
          %265 = sbr.rel (%p263) target = $region32
        $region31: #{fcnet_forward.1} parent=11 // pred_region
          %s267 = ssub.s32 2048, 2048
          %268 = vsyncadd [#allocation12], %s267
          %s269 = sshll.u32 [#allocation11], 4
          %s270 = int_to_ptr.vmem [resolvable:$true] %s269
          %275 = dma.hbm_to_vmem [thread:$0]  %s5, 2048, %s270, [#allocation12], 64, 64, 4
        $region32: #{fcnet_forward.1} parent=11 // pred_fallthru
          _
        // Predicated region
        $region33: #{fcnet_forward.1} parent=11 // pred_check
          %p276 = pneg %p174
        $region34: #{fcnet_forward.1} parent=11 // pred_check_branch
          %278 = sbr.rel (%p276) target = $region36
        $region35: #{fcnet_forward.1} parent=11 // pred_region
          %s280 = ssub.s32 16, 16
          %281 = vsyncadd [#allocation12], %s280
          %s283 = sshll.u32 [#allocation13], 4
          %s284 = int_to_ptr.vmem [resolvable:$true] %s283
          %286 = dma.hbm_to_vmem [thread:$0]  %s6, 16, %s284, [#allocation12]
        $region36: #{fcnet_forward.1} parent=11 // pred_fallthru
          _
      $region12: #{fcnet_forward.1} parent=5 // pred_fallthru
        _
      %p287 = scmp.lt.s32.totalorder %s22, 2
      // Predicated region
      $region37: #{fcnet_forward.1} parent=5 // pred_check
        %p288 = pneg %p287
      $region38: #{fcnet_forward.1} parent=5 // pred_check_branch
        %290 = sbr.rel (%p288) target = $region40
      $region39: #{fcnet_forward.1} parent=5 // pred_region
        // Predicated region
        $region41: #{fcnet_forward.1} parent=39 // pred_check
          %p291 = pneg %p42
        $region42: #{fcnet_forward.1} parent=39 // pred_check_branch
          %293 = sbr.rel (%p291) target = $region44
        $region43: #{fcnet_forward.1} parent=39 // pred_region
          %s294 = sand.u32 %s32, 1
          %s295 = scalar_lea.sflag [#allocation3], %s294
          %s296 = sand.u32 %s32, 1
          %s297 = smul.addr %s296, 8
          %s298 = scalar_lea.vmem [#allocation2], %s297
          %s300 = ssub.s32 128, 128
          %301 = vsyncadd %s295, %s300
          %s302 = smul.addr %s22, 128
          %s303 = scalar_lea.hbm %s0, %s302
          %s305 = sshll.u32 %s298, 4
          %s306 = int_to_ptr.vmem [resolvable:$true] %s305
          %308 = dma.hbm_to_vmem [thread:$0]  %s303, 128, %s306, %s295
        $region44: #{fcnet_forward.1} parent=39 // pred_fallthru
          _
      $region40: #{fcnet_forward.1} parent=5 // pred_fallthru
        _
      %p309 = scmp.le.s32.totalorder 1, %s22
      %p310 = scmp.lt.s32.totalorder %s22, 3
      %p311 = pnand %p309, %p310
      %p312 = pneg %p311
      // Predicated region
      $region45: #{fcnet_forward.1} parent=5 // pred_check
        _
      $region46: #{fcnet_forward.1} parent=5 // pred_check_branch
        %314 = sbr.rel (%p311) target = $region48
      $region47: #{fcnet_forward.1} parent=5 // pred_region
        %s315 = ssub.s32 %s22, 1
        %s316 = sand.u32 %s35, 1
        %s317 = scalar_lea.sflag [#allocation3], %s316
        %s318 = sand.u32 %s35, 1
        %s319 = smul.addr %s318, 8
        %s320 = scalar_lea.vmem [#allocation2], %s319
        // Predicated region
        $region49: #{fcnet_forward.1} parent=47 // pred_check
          %p321 = pneg %p48
        $region50: #{fcnet_forward.1} parent=47 // pred_check_branch
          %323 = sbr.rel (%p321) target = $region52
        $region51: #{fcnet_forward.1} parent=47 // pred_region
          %324 = dma.done %s317, 128
        $region52: #{fcnet_forward.1} parent=47 // pred_fallthru
          _
        // Predicated region
        $region53: #{fcnet_forward.1} parent=47 // pred_check
          %p325 = pneg %p69
        $region54: #{fcnet_forward.1} parent=47 // pred_check_branch
          %327 = sbr.rel (%p325) target = $region56
        $region55: #{fcnet_forward.1} parent=47 // pred_region
          %328 = dma.done [#allocation6], 1024
        $region56: #{fcnet_forward.1} parent=47 // pred_fallthru
          _
        // Predicated region
        $region57: #{fcnet_forward.1} parent=47 // pred_check
          %p329 = pneg %p90
        $region58: #{fcnet_forward.1} parent=47 // pred_check_branch
          %331 = sbr.rel (%p329) target = $region60
        $region59: #{fcnet_forward.1} parent=47 // pred_region
          %332 = dma.done [#allocation6], 64
        $region60: #{fcnet_forward.1} parent=47 // pred_fallthru
          _
        // Predicated region
        $region61: #{fcnet_forward.1} parent=47 // pred_check
          %p333 = pneg %p111
        $region62: #{fcnet_forward.1} parent=47 // pred_check_branch
          %335 = sbr.rel (%p333) target = $region64
        $region63: #{fcnet_forward.1} parent=47 // pred_region
          %336 = dma.done [#allocation9], 8192
        $region64: #{fcnet_forward.1} parent=47 // pred_fallthru
          _
        // Predicated region
        $region65: #{fcnet_forward.1} parent=47 // pred_check
          %p337 = pneg %p132
        $region66: #{fcnet_forward.1} parent=47 // pred_check_branch
          %339 = sbr.rel (%p337) target = $region68
        $region67: #{fcnet_forward.1} parent=47 // pred_region
          %340 = dma.done [#allocation9], 32
        $region68: #{fcnet_forward.1} parent=47 // pred_fallthru
          _
        // Predicated region
        $region69: #{fcnet_forward.1} parent=47 // pred_check
          %p341 = pneg %p153
        $region70: #{fcnet_forward.1} parent=47 // pred_check_branch
          %343 = sbr.rel (%p341) target = $region72
        $region71: #{fcnet_forward.1} parent=47 // pred_region
          %344 = dma.done [#allocation12], 2048
        $region72: #{fcnet_forward.1} parent=47 // pred_fallthru
          _
        // Predicated region
        $region73: #{fcnet_forward.1} parent=47 // pred_check
          %p345 = pneg %p174
        $region74: #{fcnet_forward.1} parent=47 // pred_check_branch
          %347 = sbr.rel (%p345) target = $region76
        $region75: #{fcnet_forward.1} parent=47 // pred_region
          %348 = dma.done [#allocation12], 16
        $region76: #{fcnet_forward.1} parent=47 // pred_fallthru
          _
        %s349 = sand.u32 %s35, 1
        %s350 = scalar_lea.sflag [#allocation3], %s349
        %s351 = sand.u32 %s35, 1
        %s352 = smul.addr %s351, 8
        %s353 = scalar_lea.vmem [#allocation2], %s352
        %p354 = pneg %p48
        %p355 = pneg %p45
        %p356 = pneg %p69
        %p357 = pneg %p66
        %p358 = pneg %p90
        %p359 = pneg %p87
        %p360 = pneg %p111
        %p361 = pneg %p108
        %p362 = pneg %p132
        %p363 = pneg %p129
        %p364 = pneg %p153
        %p365 = pneg %p150
        %p366 = pneg %p174
        %p367 = pneg %p171
        %p368 = pneg %p200
        %p369 = pneg %p197
        %s370 = sand.u32 %s187, 1
        %s371 = scalar_lea.sflag [#allocation4], %s370
        %s372 = sand.u32 %s187, 1
        %s373 = smul.addr %s372, 4
        %s374 = scalar_lea.vmem [#allocation14], %s373
        %v376 = vld [vmem:[%s320] sm:$0xff]
        %v377 = vpack.c.bf16 %v376, %v376
        %v378 = vld [vmem:[#allocation5] sm:$0xff]
        %v379 = vld [vmem:[#allocation5 + $0x8] sm:$0xff]
        %v380 = vld [vmem:[#allocation5 + $0x10] sm:$0xff]
        %v381 = vld [vmem:[#allocation5 + $0x18] sm:$0xff]
        %v382 = vld [vmem:[#allocation5 + $0x20] sm:$0xff]
        %v383 = vld [vmem:[#allocation5 + $0x28] sm:$0xff]
        %v384 = vld [vmem:[#allocation5 + $0x30] sm:$0xff]
        %v385 = vld [vmem:[#allocation5 + $0x38] sm:$0xff]
        %v394 = vunpack.c.l.b16 %v378
        %v395 = vunpack.c.h.b16 %v378
        %v396 = vunpack.c.l.b16 %v379
        %v397 = vunpack.c.h.b16 %v379
        %v398 = vunpack.c.l.b16 %v380
        %v399 = vunpack.c.h.b16 %v380
        %v400 = vunpack.c.l.b16 %v381
        %v401 = vunpack.c.h.b16 %v381
        %v402 = vunpack.c.l.b16 %v382
        %v403 = vunpack.c.h.b16 %v382
        %v404 = vunpack.c.l.b16 %v383
        %v405 = vunpack.c.h.b16 %v383
        %v406 = vunpack.c.l.b16 %v384
        %v407 = vunpack.c.h.b16 %v384
        %v408 = vunpack.c.l.b16 %v385
        %v409 = vunpack.c.h.b16 %v385
        %v410 = vpack.c.b16 %v398, %v394
        %v411 = vpack.c.b16 %v399, %v395
        %v412 = vpack.c.b16 %v400, %v396
        %v413 = vpack.c.b16 %v401, %v397
        %v414 = vpack.c.b16 %v406, %v402
        %v415 = vpack.c.b16 %v407, %v403
        %v416 = vpack.c.b16 %v408, %v404
        %v417 = vpack.c.b16 %v409, %v405
        %vm426 = vcmask 261120
        %v428 = vsel %vm426, %v377, 0
        %430 = vmatprep.subr.bf16.mxu0 %v411
        %431 = vmatpush1.bf16.msra.mxu0 %v410
        %432 = vmatprep.subr.bf16.mxu0 %v415
        %433 = vmatpush1.bf16.msra.mxu0 %v414
        %434 = vmatprep.subr.bf16.mxu0 0
        %435 = vmatpush1.bf16.msra.mxu0 0
        %436 = vmatprep.subr.bf16.mxu0 0
        %437 = vmatpush1.bf16.msra.mxu0 0
        %438 = vmatprep.subr.bf16.mxu0 0
        %439 = vmatpush1.bf16.msra.mxu0 0
        %440 = vmatprep.subr.bf16.mxu0 0
        %441 = vmatpush1.bf16.msra.mxu0 0
        %442 = vmatprep.subr.bf16.mxu0 0
        %443 = vmatpush1.bf16.msra.mxu0 0
        %444 = vmatprep.subr.bf16.mxu0 0
        %445 = vmatpush1.bf16.msra.mxu0 0
        %446 = vmatprep.subr.bf16.mxu0 0
        %447 = vmatpush1.bf16.msra.mxu0 0
        %448 = vmatprep.subr.bf16.mxu0 0
        %449 = vmatpush1.bf16.msra.mxu0 0
        %450 = vmatprep.subr.bf16.mxu0 0
        %451 = vmatpush1.bf16.msra.mxu0 0
        %452 = vmatprep.subr.bf16.mxu0 0
        %453 = vmatpush1.bf16.msra.mxu0 0
        %454 = vmatprep.subr.bf16.mxu0 0
        %455 = vmatpush1.bf16.msra.mxu0 0
        %456 = vmatprep.subr.bf16.mxu0 0
        %457 = vmatpush1.bf16.msra.mxu0 0
        %458 = vmatprep.subr.bf16.mxu0 0
        %459 = vmatpush1.bf16.msra.mxu0 0
        %460 = vmatprep.subr.bf16.mxu0 0
        %461 = vmatpush1.bf16.msra.mxu0 0
        %462 = vmatprep.mubr.bf16.mxu0 0
        %463 = vmatmul.mubr.bf16.gmra.mrb[0].mxu0 %v428
        %v464 = vpop.f32.mrb[0].mxu0
        %v465 = vadd.f32 0.0, %v464
        %v466 = vpop.f32.mrb[0].mxu0
        %v467 = vadd.f32 0.0, %v466
        %v468 = vpop.f32.mrb[0].mxu0
        %v469 = vpop.f32.mrb[0].mxu0
        %470 = vdwg.mxu0
        %471 = vmatprep.subr.bf16.mxu0 %v413
        %472 = vmatpush1.bf16.msra.mxu0 %v412
        %473 = vmatprep.subr.bf16.mxu0 %v417
        %474 = vmatpush1.bf16.msra.mxu0 %v416
        %475 = vmatprep.subr.bf16.mxu0 0
        %476 = vmatpush1.bf16.msra.mxu0 0
        %477 = vmatprep.subr.bf16.mxu0 0
        %478 = vmatpush1.bf16.msra.mxu0 0
        %479 = vmatprep.subr.bf16.mxu0 0
        %480 = vmatpush1.bf16.msra.mxu0 0
        %481 = vmatprep.subr.bf16.mxu0 0
        %482 = vmatpush1.bf16.msra.mxu0 0
        %483 = vmatprep.subr.bf16.mxu0 0
        %484 = vmatpush1.bf16.msra.mxu0 0
        %485 = vmatprep.subr.bf16.mxu0 0
        %486 = vmatpush1.bf16.msra.mxu0 0
        %487 = vmatprep.subr.bf16.mxu0 0
        %488 = vmatpush1.bf16.msra.mxu0 0
        %489 = vmatprep.subr.bf16.mxu0 0
        %490 = vmatpush1.bf16.msra.mxu0 0
        %491 = vmatprep.subr.bf16.mxu0 0
        %492 = vmatpush1.bf16.msra.mxu0 0
        %493 = vmatprep.subr.bf16.mxu0 0
        %494 = vmatpush1.bf16.msra.mxu0 0
        %495 = vmatprep.subr.bf16.mxu0 0
        %496 = vmatpush1.bf16.msra.mxu0 0
        %497 = vmatprep.subr.bf16.mxu0 0
        %498 = vmatpush1.bf16.msra.mxu0 0
        %499 = vmatprep.subr.bf16.mxu0 0
        %500 = vmatpush1.bf16.msra.mxu0 0
        %501 = vmatprep.subr.bf16.mxu0 0
        %502 = vmatpush1.bf16.msra.mxu0 0
        %503 = vmatprep.mubr.bf16.mxu0 0
        %504 = vmatmul.mubr.bf16.gmra.mrb[0].mxu0 %v428
        %v505 = vpop.f32.mrb[0].mxu0
        %v506 = vadd.f32 0.0, %v505
        %v507 = vpop.f32.mrb[0].mxu0
        %v508 = vadd.f32 0.0, %v507
        %v509 = vpop.f32.mrb[0].mxu0
        %v510 = vpop.f32.mrb[0].mxu0
        %511 = vdwg.mxu0
        %v512 = vpack.c.bf16 %v465, %v465
        %v513 = vpack.c.bf16 %v467, %v467
        %v514 = vpack.c.bf16 %v506, %v506
        %v515 = vpack.c.bf16 %v508, %v508
        %v516 = vld [vmem:[#allocation7] sm:$0xf]
        %v518 = vlaneseq
        %v519 = vshrl.u32 %v518, 7
        %v520 = vsub.s32 0, %v519
        %v521 = vrot.slane %v516, %v520
        %v522 = vlaneseq
        %v523 = vshrl.u32 %v522, 7
        %v524 = vsub.s32 1, %v523
        %v525 = vrot.slane %v516, %v524
        %v526 = vlaneseq
        %v527 = vshrl.u32 %v526, 7
        %v528 = vsub.s32 2, %v527
        %v529 = vrot.slane %v516, %v528
        %v530 = vlaneseq
        %v531 = vshrl.u32 %v530, 7
        %v532 = vsub.s32 3, %v531
        %v533 = vrot.slane %v516, %v532
        %v538 = vpack.c.bf16 %v521, %v521
        %v539 = vpack.c.bf16 %v525, %v525
        %v540 = vpack.c.bf16 %v529, %v529
        %v541 = vpack.c.bf16 %v533, %v533
        %v543 = vpack.i.b16 %v538, %v538
        %v545 = vlaneseq
        %v546 = vshrl.u32 %v545, 7
        %v547 = vsub.s32 0, %v546
        %v548 = vrot.slane %v543, %v547
        %v550 = vpack.i.b16 %v539, %v539
        %v552 = vlaneseq
        %v553 = vshrl.u32 %v552, 7
        %v554 = vsub.s32 0, %v553
        %v555 = vrot.slane %v550, %v554
        %v557 = vpack.i.b16 %v540, %v540
        %v559 = vlaneseq
        %v560 = vshrl.u32 %v559, 7
        %v561 = vsub.s32 0, %v560
        %v562 = vrot.slane %v557, %v561
        %v564 = vpack.i.b16 %v541, %v541
        %v566 = vlaneseq
        %v567 = vshrl.u32 %v566, 7
        %v568 = vsub.s32 0, %v567
        %v569 = vrot.slane %v564, %v568
        %v570 = vadd.bf16 %v512, %v548
        %v571 = vadd.bf16 %v513, %v555
        %v572 = vadd.bf16 %v514, %v562
        %v573 = vadd.bf16 %v515, %v569
        %v574 = vmax.bf16 %v570, 0
        %v575 = vmax.bf16 %v571, 0
        %v576 = vmax.bf16 %v572, 0
        %v577 = vmax.bf16 %v573, 0
        %v578 = vld [vmem:[#allocation8] sm:$0xff]
        %v579 = vld [vmem:[#allocation8 + $0x8] sm:$0xff]
        %v580 = vld [vmem:[#allocation8 + $0x10] sm:$0xff]
        %v581 = vld [vmem:[#allocation8 + $0x18] sm:$0xff]
        %v582 = vld [vmem:[#allocation8 + $0x20] sm:$0xff]
        %v583 = vld [vmem:[#allocation8 + $0x28] sm:$0xff]
        %v584 = vld [vmem:[#allocation8 + $0x30] sm:$0xff]
        %v585 = vld [vmem:[#allocation8 + $0x38] sm:$0xff]
        %v586 = vld [vmem:[#allocation8 + $0x40] sm:$0xff]
        %v587 = vld [vmem:[#allocation8 + $0x48] sm:$0xff]
        %v588 = vld [vmem:[#allocation8 + $0x50] sm:$0xff]
        %v589 = vld [vmem:[#allocation8 + $0x58] sm:$0xff]
        %v590 = vld [vmem:[#allocation8 + $0x60] sm:$0xff]
        %v591 = vld [vmem:[#allocation8 + $0x68] sm:$0xff]
        %v592 = vld [vmem:[#allocation8 + $0x70] sm:$0xff]
        %v593 = vld [vmem:[#allocation8 + $0x78] sm:$0xff]
        %v594 = vld [vmem:[#allocation8 + $0x80] sm:$0xff]
        %v595 = vld [vmem:[#allocation8 + $0x88] sm:$0xff]
        %v596 = vld [vmem:[#allocation8 + $0x90] sm:$0xff]
        %v597 = vld [vmem:[#allocation8 + $0x98] sm:$0xff]
        %v598 = vld [vmem:[#allocation8 + $0xa0] sm:$0xff]
        %v599 = vld [vmem:[#allocation8 + $0xa8] sm:$0xff]
        %v600 = vld [vmem:[#allocation8 + $0xb0] sm:$0xff]
        %v601 = vld [vmem:[#allocation8 + $0xb8] sm:$0xff]
        %v602 = vld [vmem:[#allocation8 + $0xc0] sm:$0xff]
        %v603 = vld [vmem:[#allocation8 + $0xc8] sm:$0xff]
        %v604 = vld [vmem:[#allocation8 + $0xd0] sm:$0xff]
        %v605 = vld [vmem:[#allocation8 + $0xd8] sm:$0xff]
        %v606 = vld [vmem:[#allocation8 + $0xe0] sm:$0xff]
        %v607 = vld [vmem:[#allocation8 + $0xe8] sm:$0xff]
        %v608 = vld [vmem:[#allocation8 + $0xf0] sm:$0xff]
        %v609 = vld [vmem:[#allocation8 + $0xf8] sm:$0xff]
        %v610 = vld [vmem:[#allocation8 + $0x100] sm:$0xff]
        %v611 = vld [vmem:[#allocation8 + $0x108] sm:$0xff]
        %v612 = vld [vmem:[#allocation8 + $0x110] sm:$0xff]
        %v613 = vld [vmem:[#allocation8 + $0x118] sm:$0xff]
        %v614 = vld [vmem:[#allocation8 + $0x120] sm:$0xff]
        %v615 = vld [vmem:[#allocation8 + $0x128] sm:$0xff]
        %v616 = vld [vmem:[#allocation8 + $0x130] sm:$0xff]
        %v617 = vld [vmem:[#allocation8 + $0x138] sm:$0xff]
        %v618 = vld [vmem:[#allocation8 + $0x140] sm:$0xff]
        %v619 = vld [vmem:[#allocation8 + $0x148] sm:$0xff]
        %v620 = vld [vmem:[#allocation8 + $0x150] sm:$0xff]
        %v621 = vld [vmem:[#allocation8 + $0x158] sm:$0xff]
        %v622 = vld [vmem:[#allocation8 + $0x160] sm:$0xff]
        %v623 = vld [vmem:[#allocation8 + $0x168] sm:$0xff]
        %v624 = vld [vmem:[#allocation8 + $0x170] sm:$0xff]
        %v625 = vld [vmem:[#allocation8 + $0x178] sm:$0xff]
        %v626 = vld [vmem:[#allocation8 + $0x180] sm:$0xff]
        %v627 = vld [vmem:[#allocation8 + $0x188] sm:$0xff]
        %v628 = vld [vmem:[#allocation8 + $0x190] sm:$0xff]
        %v629 = vld [vmem:[#allocation8 + $0x198] sm:$0xff]
        %v630 = vld [vmem:[#allocation8 + $0x1a0] sm:$0xff]
        %v631 = vld [vmem:[#allocation8 + $0x1a8] sm:$0xff]
        %v632 = vld [vmem:[#allocation8 + $0x1b0] sm:$0xff]
        %v633 = vld [vmem:[#allocation8 + $0x1b8] sm:$0xff]
        %v634 = vld [vmem:[#allocation8 + $0x1c0] sm:$0xff]
        %v635 = vld [vmem:[#allocation8 + $0x1c8] sm:$0xff]
        %v636 = vld [vmem:[#allocation8 + $0x1d0] sm:$0xff]
        %v637 = vld [vmem:[#allocation8 + $0x1d8] sm:$0xff]
        %v638 = vld [vmem:[#allocation8 + $0x1e0] sm:$0xff]
        %v639 = vld [vmem:[#allocation8 + $0x1e8] sm:$0xff]
        %v640 = vld [vmem:[#allocation8 + $0x1f0] sm:$0xff]
        %v641 = vld [vmem:[#allocation8 + $0x1f8] sm:$0xff]
        %v706 = vunpack.c.l.b16 %v578
        %v707 = vunpack.c.h.b16 %v578
        %v708 = vunpack.c.l.b16 %v579
        %v709 = vunpack.c.h.b16 %v579
        %v710 = vunpack.c.l.b16 %v580
        %v711 = vunpack.c.h.b16 %v580
        %v712 = vunpack.c.l.b16 %v581
        %v713 = vunpack.c.h.b16 %v581
        %v714 = vunpack.c.l.b16 %v582
        %v715 = vunpack.c.h.b16 %v582
        %v716 = vunpack.c.l.b16 %v583
        %v717 = vunpack.c.h.b16 %v583
        %v718 = vunpack.c.l.b16 %v584
        %v719 = vunpack.c.h.b16 %v584
        %v720 = vunpack.c.l.b16 %v585
        %v721 = vunpack.c.h.b16 %v585
        %v722 = vunpack.c.l.b16 %v586
        %v723 = vunpack.c.h.b16 %v586
        %v724 = vunpack.c.l.b16 %v587
        %v725 = vunpack.c.h.b16 %v587
        %v726 = vunpack.c.l.b16 %v588
        %v727 = vunpack.c.h.b16 %v588
        %v728 = vunpack.c.l.b16 %v589
        %v729 = vunpack.c.h.b16 %v589
        %v730 = vunpack.c.l.b16 %v590
        %v731 = vunpack.c.h.b16 %v590
        %v732 = vunpack.c.l.b16 %v591
        %v733 = vunpack.c.h.b16 %v591
        %v734 = vunpack.c.l.b16 %v592
        %v735 = vunpack.c.h.b16 %v592
        %v736 = vunpack.c.l.b16 %v593
        %v737 = vunpack.c.h.b16 %v593
        %v738 = vunpack.c.l.b16 %v594
        %v739 = vunpack.c.h.b16 %v594
        %v740 = vunpack.c.l.b16 %v595
        %v741 = vunpack.c.h.b16 %v595
        %v742 = vunpack.c.l.b16 %v596
        %v743 = vunpack.c.h.b16 %v596
        %v744 = vunpack.c.l.b16 %v597
        %v745 = vunpack.c.h.b16 %v597
        %v746 = vunpack.c.l.b16 %v598
        %v747 = vunpack.c.h.b16 %v598
        %v748 = vunpack.c.l.b16 %v599
        %v749 = vunpack.c.h.b16 %v599
        %v750 = vunpack.c.l.b16 %v600
        %v751 = vunpack.c.h.b16 %v600
        %v752 = vunpack.c.l.b16 %v601
        %v753 = vunpack.c.h.b16 %v601
        %v754 = vunpack.c.l.b16 %v602
        %v755 = vunpack.c.h.b16 %v602
        %v756 = vunpack.c.l.b16 %v603
        %v757 = vunpack.c.h.b16 %v603
        %v758 = vunpack.c.l.b16 %v604
        %v759 = vunpack.c.h.b16 %v604
        %v760 = vunpack.c.l.b16 %v605
        %v761 = vunpack.c.h.b16 %v605
        %v762 = vunpack.c.l.b16 %v606
        %v763 = vunpack.c.h.b16 %v606
        %v764 = vunpack.c.l.b16 %v607
        %v765 = vunpack.c.h.b16 %v607
        %v766 = vunpack.c.l.b16 %v608
        %v767 = vunpack.c.h.b16 %v608
        %v768 = vunpack.c.l.b16 %v609
        %v769 = vunpack.c.h.b16 %v609
        %v770 = vunpack.c.l.b16 %v610
        %v771 = vunpack.c.h.b16 %v610
        %v772 = vunpack.c.l.b16 %v611
        %v773 = vunpack.c.h.b16 %v611
        %v774 = vunpack.c.l.b16 %v612
        %v775 = vunpack.c.h.b16 %v612
        %v776 = vunpack.c.l.b16 %v613
        %v777 = vunpack.c.h.b16 %v613
        %v778 = vunpack.c.l.b16 %v614
        %v779 = vunpack.c.h.b16 %v614
        %v780 = vunpack.c.l.b16 %v615
        %v781 = vunpack.c.h.b16 %v615
        %v782 = vunpack.c.l.b16 %v616
        %v783 = vunpack.c.h.b16 %v616
        %v784 = vunpack.c.l.b16 %v617
        %v785 = vunpack.c.h.b16 %v617
        %v786 = vunpack.c.l.b16 %v618
        %v787 = vunpack.c.h.b16 %v618
        %v788 = vunpack.c.l.b16 %v619
        %v789 = vunpack.c.h.b16 %v619
        %v790 = vunpack.c.l.b16 %v620
        %v791 = vunpack.c.h.b16 %v620
        %v792 = vunpack.c.l.b16 %v621
        %v793 = vunpack.c.h.b16 %v621
        %v794 = vunpack.c.l.b16 %v622
        %v795 = vunpack.c.h.b16 %v622
        %v796 = vunpack.c.l.b16 %v623
        %v797 = vunpack.c.h.b16 %v623
        %v798 = vunpack.c.l.b16 %v624
        %v799 = vunpack.c.h.b16 %v624
        %v800 = vunpack.c.l.b16 %v625
        %v801 = vunpack.c.h.b16 %v625
        %v802 = vunpack.c.l.b16 %v626
        %v803 = vunpack.c.h.b16 %v626
        %v804 = vunpack.c.l.b16 %v627
        %v805 = vunpack.c.h.b16 %v627
        %v806 = vunpack.c.l.b16 %v628
        %v807 = vunpack.c.h.b16 %v628
        %v808 = vunpack.c.l.b16 %v629
        %v809 = vunpack.c.h.b16 %v629
        %v810 = vunpack.c.l.b16 %v630
        %v811 = vunpack.c.h.b16 %v630
        %v812 = vunpack.c.l.b16 %v631
        %v813 = vunpack.c.h.b16 %v631
        %v814 = vunpack.c.l.b16 %v632
        %v815 = vunpack.c.h.b16 %v632
        %v816 = vunpack.c.l.b16 %v633
        %v817 = vunpack.c.h.b16 %v633
        %v818 = vunpack.c.l.b16 %v634
        %v819 = vunpack.c.h.b16 %v634
        %v820 = vunpack.c.l.b16 %v635
        %v821 = vunpack.c.h.b16 %v635
        %v822 = vunpack.c.l.b16 %v636
        %v823 = vunpack.c.h.b16 %v636
        %v824 = vunpack.c.l.b16 %v637
        %v825 = vunpack.c.h.b16 %v637
        %v826 = vunpack.c.l.b16 %v638
        %v827 = vunpack.c.h.b16 %v638
        %v828 = vunpack.c.l.b16 %v639
        %v829 = vunpack.c.h.b16 %v639
        %v830 = vunpack.c.l.b16 %v640
        %v831 = vunpack.c.h.b16 %v640
        %v832 = vunpack.c.l.b16 %v641
        %v833 = vunpack.c.h.b16 %v641
        %v834 = vpack.c.b16 %v708, %v706
        %v835 = vpack.c.b16 %v709, %v707
        %v836 = vpack.c.b16 %v712, %v710
        %v837 = vpack.c.b16 %v713, %v711
        %v838 = vpack.c.b16 %v716, %v714
        %v839 = vpack.c.b16 %v717, %v715
        %v840 = vpack.c.b16 %v720, %v718
        %v841 = vpack.c.b16 %v721, %v719
        %v842 = vpack.c.b16 %v724, %v722
        %v843 = vpack.c.b16 %v725, %v723
        %v844 = vpack.c.b16 %v728, %v726
        %v845 = vpack.c.b16 %v729, %v727
        %v846 = vpack.c.b16 %v732, %v730
        %v847 = vpack.c.b16 %v733, %v731
        %v848 = vpack.c.b16 %v736, %v734
        %v849 = vpack.c.b16 %v737, %v735
        %v850 = vpack.c.b16 %v740, %v738
        %v851 = vpack.c.b16 %v741, %v739
        %v852 = vpack.c.b16 %v744, %v742
        %v853 = vpack.c.b16 %v745, %v743
        %v854 = vpack.c.b16 %v748, %v746
        %v855 = vpack.c.b16 %v749, %v747
        %v856 = vpack.c.b16 %v752, %v750
        %v857 = vpack.c.b16 %v753, %v751
        %v858 = vpack.c.b16 %v756, %v754
        %v859 = vpack.c.b16 %v757, %v755
        %v860 = vpack.c.b16 %v760, %v758
        %v861 = vpack.c.b16 %v761, %v759
        %v862 = vpack.c.b16 %v764, %v762
        %v863 = vpack.c.b16 %v765, %v763
        %v864 = vpack.c.b16 %v768, %v766
        %v865 = vpack.c.b16 %v769, %v767
        %v866 = vpack.c.b16 %v772, %v770
        %v867 = vpack.c.b16 %v773, %v771
        %v868 = vpack.c.b16 %v776, %v774
        %v869 = vpack.c.b16 %v777, %v775
        %v870 = vpack.c.b16 %v780, %v778
        %v871 = vpack.c.b16 %v781, %v779
        %v872 = vpack.c.b16 %v784, %v782
        %v873 = vpack.c.b16 %v785, %v783
        %v874 = vpack.c.b16 %v788, %v786
        %v875 = vpack.c.b16 %v789, %v787
        %v876 = vpack.c.b16 %v792, %v790
        %v877 = vpack.c.b16 %v793, %v791
        %v878 = vpack.c.b16 %v796, %v794
        %v879 = vpack.c.b16 %v797, %v795
        %v880 = vpack.c.b16 %v800, %v798
        %v881 = vpack.c.b16 %v801, %v799
        %v882 = vpack.c.b16 %v804, %v802
        %v883 = vpack.c.b16 %v805, %v803
        %v884 = vpack.c.b16 %v808, %v806
        %v885 = vpack.c.b16 %v809, %v807
        %v886 = vpack.c.b16 %v812, %v810
        %v887 = vpack.c.b16 %v813, %v811
        %v888 = vpack.c.b16 %v816, %v814
        %v889 = vpack.c.b16 %v817, %v815
        %v890 = vpack.c.b16 %v820, %v818
        %v891 = vpack.c.b16 %v821, %v819
        %v892 = vpack.c.b16 %v824, %v822
        %v893 = vpack.c.b16 %v825, %v823
        %v894 = vpack.c.b16 %v828, %v826
        %v895 = vpack.c.b16 %v829, %v827
        %v896 = vpack.c.b16 %v832, %v830
        %v897 = vpack.c.b16 %v833, %v831
        %962 = vmatprep.subr.bf16.mxu0 %v835
        %963 = vmatpush1.bf16.msra.mxu0 %v834
        %964 = vmatprep.subr.bf16.mxu0 %v837
        %965 = vmatpush1.bf16.msra.mxu0 %v836
        %966 = vmatprep.subr.bf16.mxu0 %v839
        %967 = vmatpush1.bf16.msra.mxu0 %v838
        %968 = vmatprep.subr.bf16.mxu0 %v841
        %969 = vmatpush1.bf16.msra.mxu0 %v840
        %970 = vmatprep.subr.bf16.mxu0 %v843
        %971 = vmatpush1.bf16.msra.mxu0 %v842
        %972 = vmatprep.subr.bf16.mxu0 %v845
        %973 = vmatpush1.bf16.msra.mxu0 %v844
        %974 = vmatprep.subr.bf16.mxu0 %v847
        %975 = vmatpush1.bf16.msra.mxu0 %v846
        %976 = vmatprep.subr.bf16.mxu0 %v849
        %977 = vmatpush1.bf16.msra.mxu0 %v848
        %978 = vmatprep.subr.bf16.mxu0 %v851
        %979 = vmatpush1.bf16.msra.mxu0 %v850
        %980 = vmatprep.subr.bf16.mxu0 %v853
        %981 = vmatpush1.bf16.msra.mxu0 %v852
        %982 = vmatprep.subr.bf16.mxu0 %v855
        %983 = vmatpush1.bf16.msra.mxu0 %v854
        %984 = vmatprep.subr.bf16.mxu0 %v857
        %985 = vmatpush1.bf16.msra.mxu0 %v856
        %986 = vmatprep.subr.bf16.mxu0 %v859
        %987 = vmatpush1.bf16.msra.mxu0 %v858
        %988 = vmatprep.subr.bf16.mxu0 %v861
        %989 = vmatpush1.bf16.msra.mxu0 %v860
        %990 = vmatprep.subr.bf16.mxu0 %v863
        %991 = vmatpush1.bf16.msra.mxu0 %v862
        %992 = vmatprep.subr.bf16.mxu0 %v865
        %993 = vmatpush1.bf16.msra.mxu0 %v864
        %994 = vmatprep.mubr.bf16.mxu0 %v575
        %995 = vmatmul.mubr.bf16.gmra.mrb[0].mxu0 %v574
        %v996 = vpop.f32.mrb[0].mxu0
        %v997 = vadd.f32 0.0, %v996
        %v998 = vpop.f32.mrb[0].mxu0
        %v999 = vadd.f32 0.0, %v998
        %v1000 = vpop.f32.mrb[0].mxu0
        %v1001 = vpop.f32.mrb[0].mxu0
        %1002 = vdwg.mxu0
        %1003 = vmatprep.subr.bf16.mxu0 %v867
        %1004 = vmatpush1.bf16.msra.mxu0 %v866
        %1005 = vmatprep.subr.bf16.mxu0 %v869
        %1006 = vmatpush1.bf16.msra.mxu0 %v868
        %1007 = vmatprep.subr.bf16.mxu0 %v871
        %1008 = vmatpush1.bf16.msra.mxu0 %v870
        %1009 = vmatprep.subr.bf16.mxu0 %v873
        %1010 = vmatpush1.bf16.msra.mxu0 %v872
        %1011 = vmatprep.subr.bf16.mxu0 %v875
        %1012 = vmatpush1.bf16.msra.mxu0 %v874
        %1013 = vmatprep.subr.bf16.mxu0 %v877
        %1014 = vmatpush1.bf16.msra.mxu0 %v876
        %1015 = vmatprep.subr.bf16.mxu0 %v879
        %1016 = vmatpush1.bf16.msra.mxu0 %v878
        %1017 = vmatprep.subr.bf16.mxu0 %v881
        %1018 = vmatpush1.bf16.msra.mxu0 %v880
        %1019 = vmatprep.subr.bf16.mxu0 %v883
        %1020 = vmatpush1.bf16.msra.mxu0 %v882
        %1021 = vmatprep.subr.bf16.mxu0 %v885
        %1022 = vmatpush1.bf16.msra.mxu0 %v884
        %1023 = vmatprep.subr.bf16.mxu0 %v887
        %1024 = vmatpush1.bf16.msra.mxu0 %v886
        %1025 = vmatprep.subr.bf16.mxu0 %v889
        %1026 = vmatpush1.bf16.msra.mxu0 %v888
        %1027 = vmatprep.subr.bf16.mxu0 %v891
        %1028 = vmatpush1.bf16.msra.mxu0 %v890
        %1029 = vmatprep.subr.bf16.mxu0 %v893
        %1030 = vmatpush1.bf16.msra.mxu0 %v892
        %1031 = vmatprep.subr.bf16.mxu0 %v895
        %1032 = vmatpush1.bf16.msra.mxu0 %v894
        %1033 = vmatprep.subr.bf16.mxu0 %v897
        %1034 = vmatpush1.bf16.msra.mxu0 %v896
        %1035 = vmatprep.mubr.bf16.mxu0 %v577
        %1036 = vmatmul.mubr.bf16.gmra.mrb[0].mxu0 %v576
        %v1037 = vpop.f32.mrb[0].mxu0
        %v1038 = vadd.f32 %v997, %v1037
        %v1039 = vpop.f32.mrb[0].mxu0
        %v1040 = vadd.f32 %v999, %v1039
        %v1041 = vpop.f32.mrb[0].mxu0
        %v1042 = vpop.f32.mrb[0].mxu0
        %1043 = vdwg.mxu0
        %v1044 = vpack.c.bf16 %v1038, %v1038
        %v1045 = vpack.c.bf16 %v1040, %v1040
        %v1046 = vld [vmem:[#allocation10] sm:$0x3]
        %v1048 = vlaneseq
        %v1049 = vshrl.u32 %v1048, 7
        %v1050 = vsub.s32 0, %v1049
        %v1051 = vrot.slane %v1046, %v1050
        %v1052 = vlaneseq
        %v1053 = vshrl.u32 %v1052, 7
        %v1054 = vsub.s32 1, %v1053
        %v1055 = vrot.slane %v1046, %v1054
        %v1058 = vpack.c.bf16 %v1051, %v1051
        %v1059 = vpack.c.bf16 %v1055, %v1055
        %v1061 = vpack.i.b16 %v1058, %v1058
        %v1063 = vlaneseq
        %v1064 = vshrl.u32 %v1063, 7
        %v1065 = vsub.s32 0, %v1064
        %v1066 = vrot.slane %v1061, %v1065
        %v1068 = vpack.i.b16 %v1059, %v1059
        %v1070 = vlaneseq
        %v1071 = vshrl.u32 %v1070, 7
        %v1072 = vsub.s32 0, %v1071
        %v1073 = vrot.slane %v1068, %v1072
        %v1074 = vadd.bf16 %v1044, %v1066
        %v1075 = vadd.bf16 %v1045, %v1073
        %v1076 = vmax.bf16 %v1074, 0
        %v1077 = vmax.bf16 %v1075, 0
        %v1078 = vld [vmem:[#allocation11] sm:$0xf]
        %v1079 = vld [vmem:[#allocation11 + $0x4] sm:$0xf]
        %v1080 = vld [vmem:[#allocation11 + $0x8] sm:$0xf]
        %v1081 = vld [vmem:[#allocation11 + $0xc] sm:$0xf]
        %v1082 = vld [vmem:[#allocation11 + $0x10] sm:$0xf]
        %v1083 = vld [vmem:[#allocation11 + $0x14] sm:$0xf]
        %v1084 = vld [vmem:[#allocation11 + $0x18] sm:$0xf]
        %v1085 = vld [vmem:[#allocation11 + $0x1c] sm:$0xf]
        %v1086 = vld [vmem:[#allocation11 + $0x20] sm:$0xf]
        %v1087 = vld [vmem:[#allocation11 + $0x24] sm:$0xf]
        %v1088 = vld [vmem:[#allocation11 + $0x28] sm:$0xf]
        %v1089 = vld [vmem:[#allocation11 + $0x2c] sm:$0xf]
        %v1090 = vld [vmem:[#allocation11 + $0x30] sm:$0xf]
        %v1091 = vld [vmem:[#allocation11 + $0x34] sm:$0xf]
        %v1092 = vld [vmem:[#allocation11 + $0x38] sm:$0xf]
        %v1093 = vld [vmem:[#allocation11 + $0x3c] sm:$0xf]
        %v1094 = vld [vmem:[#allocation11 + $0x40] sm:$0xf]
        %v1095 = vld [vmem:[#allocation11 + $0x44] sm:$0xf]
        %v1096 = vld [vmem:[#allocation11 + $0x48] sm:$0xf]
        %v1097 = vld [vmem:[#allocation11 + $0x4c] sm:$0xf]
        %v1098 = vld [vmem:[#allocation11 + $0x50] sm:$0xf]
        %v1099 = vld [vmem:[#allocation11 + $0x54] sm:$0xf]
        %v1100 = vld [vmem:[#allocation11 + $0x58] sm:$0xf]
        %v1101 = vld [vmem:[#allocation11 + $0x5c] sm:$0xf]
        %v1102 = vld [vmem:[#allocation11 + $0x60] sm:$0xf]
        %v1103 = vld [vmem:[#allocation11 + $0x64] sm:$0xf]
        %v1104 = vld [vmem:[#allocation11 + $0x68] sm:$0xf]
        %v1105 = vld [vmem:[#allocation11 + $0x6c] sm:$0xf]
        %v1106 = vld [vmem:[#allocation11 + $0x70] sm:$0xf]
        %v1107 = vld [vmem:[#allocation11 + $0x74] sm:$0xf]
        %v1108 = vld [vmem:[#allocation11 + $0x78] sm:$0xf]
        %v1109 = vld [vmem:[#allocation11 + $0x7c] sm:$0xf]
        %v1110 = vld [vmem:[#allocation13] sm:$0x1]
        %v1112 = vlaneseq
        %v1113 = vshrl.u32 %v1112, 7
        %v1114 = vsub.s32 0, %v1113
        %v1115 = vrot.slane %v1110, %v1114
        %v1149 = vunpack.c.l.b16 %v1078
        %v1150 = vunpack.c.l.b16 %v1079
        %v1151 = vunpack.c.l.b16 %v1080
        %v1152 = vunpack.c.l.b16 %v1081
        %v1153 = vunpack.c.l.b16 %v1082
        %v1154 = vunpack.c.l.b16 %v1083
        %v1155 = vunpack.c.l.b16 %v1084
        %v1156 = vunpack.c.l.b16 %v1085
        %v1157 = vunpack.c.l.b16 %v1086
        %v1158 = vunpack.c.l.b16 %v1087
        %v1159 = vunpack.c.l.b16 %v1088
        %v1160 = vunpack.c.l.b16 %v1089
        %v1161 = vunpack.c.l.b16 %v1090
        %v1162 = vunpack.c.l.b16 %v1091
        %v1163 = vunpack.c.l.b16 %v1092
        %v1164 = vunpack.c.l.b16 %v1093
        %v1165 = vunpack.c.l.b16 %v1094
        %v1166 = vunpack.c.l.b16 %v1095
        %v1167 = vunpack.c.l.b16 %v1096
        %v1168 = vunpack.c.l.b16 %v1097
        %v1169 = vunpack.c.l.b16 %v1098
        %v1170 = vunpack.c.l.b16 %v1099
        %v1171 = vunpack.c.l.b16 %v1100
        %v1172 = vunpack.c.l.b16 %v1101
        %v1173 = vunpack.c.l.b16 %v1102
        %v1174 = vunpack.c.l.b16 %v1103
        %v1175 = vunpack.c.l.b16 %v1104
        %v1176 = vunpack.c.l.b16 %v1105
        %v1177 = vunpack.c.l.b16 %v1106
        %v1178 = vunpack.c.l.b16 %v1107
        %v1179 = vunpack.c.l.b16 %v1108
        %v1180 = vunpack.c.l.b16 %v1109
        %v1181 = vpack.c.b16 %v1150, %v1149
        %v1182 = vpack.c.b16 %v1152, %v1151
        %v1183 = vpack.c.b16 %v1154, %v1153
        %v1184 = vpack.c.b16 %v1156, %v1155
        %v1185 = vpack.c.b16 %v1158, %v1157
        %v1186 = vpack.c.b16 %v1160, %v1159
        %v1187 = vpack.c.b16 %v1162, %v1161
        %v1188 = vpack.c.b16 %v1164, %v1163
        %v1189 = vpack.c.b16 %v1166, %v1165
        %v1190 = vpack.c.b16 %v1168, %v1167
        %v1191 = vpack.c.b16 %v1170, %v1169
        %v1192 = vpack.c.b16 %v1172, %v1171
        %v1193 = vpack.c.b16 %v1174, %v1173
        %v1194 = vpack.c.b16 %v1176, %v1175
        %v1195 = vpack.c.b16 %v1178, %v1177
        %v1196 = vpack.c.b16 %v1180, %v1179
        %1213 = vmatprep.subr.bf16.mxu0 0
        %1214 = vmatpush1.bf16.msra.mxu0 %v1181
        %1215 = vmatprep.subr.bf16.mxu0 0
        %1216 = vmatpush1.bf16.msra.mxu0 %v1182
        %1217 = vmatprep.subr.bf16.mxu0 0
        %1218 = vmatpush1.bf16.msra.mxu0 %v1183
        %1219 = vmatprep.subr.bf16.mxu0 0
        %1220 = vmatpush1.bf16.msra.mxu0 %v1184
        %1221 = vmatprep.subr.bf16.mxu0 0
        %1222 = vmatpush1.bf16.msra.mxu0 %v1185
        %1223 = vmatprep.subr.bf16.mxu0 0
        %1224 = vmatpush1.bf16.msra.mxu0 %v1186
        %1225 = vmatprep.subr.bf16.mxu0 0
        %1226 = vmatpush1.bf16.msra.mxu0 %v1187
        %1227 = vmatprep.subr.bf16.mxu0 0
        %1228 = vmatpush1.bf16.msra.mxu0 %v1188
        %1229 = vmatprep.subr.bf16.mxu0 0
        %1230 = vmatpush1.bf16.msra.mxu0 %v1189
        %1231 = vmatprep.subr.bf16.mxu0 0
        %1232 = vmatpush1.bf16.msra.mxu0 %v1190
        %1233 = vmatprep.subr.bf16.mxu0 0
        %1234 = vmatpush1.bf16.msra.mxu0 %v1191
        %1235 = vmatprep.subr.bf16.mxu0 0
        %1236 = vmatpush1.bf16.msra.mxu0 %v1192
        %1237 = vmatprep.subr.bf16.mxu0 0
        %1238 = vmatpush1.bf16.msra.mxu0 %v1193
        %1239 = vmatprep.subr.bf16.mxu0 0
        %1240 = vmatpush1.bf16.msra.mxu0 %v1194
        %1241 = vmatprep.subr.bf16.mxu0 0
        %1242 = vmatpush1.bf16.msra.mxu0 %v1195
        %1243 = vmatprep.subr.bf16.mxu0 0
        %1244 = vmatpush1.bf16.msra.mxu0 %v1196
        %1245 = vmatprep.mubr.bf16.mxu0 %v1077
        %1246 = vmatmul.mubr.bf16.gmra.mrb[0].mxu0 %v1076
        %v1247 = vpop.f32.mrb[0].mxu0
        %v1248 = vadd.f32 %v1115, %v1247
        %v1249 = vpop.f32.mrb[0].mxu0
        %v1250 = vpop.f32.mrb[0].mxu0
        %v1251 = vpop.f32.mrb[0].mxu0
        %1252 = vdwg.mxu0
        %v1253 = vpack.c.bf16 %v1248, %v1248
        %vm1254 = vcmask 60416
        %1255 = vst.msk [vmem:[%s374] sm:$0xf] %vm1254, %v1253
        %s1256 = sand.u32 %s187, 1
        %s1257 = scalar_lea.sflag [#allocation4], %s1256
        %s1258 = sand.u32 %s187, 1
        %s1259 = smul.addr %s1258, 4
        %s1260 = scalar_lea.vmem [#allocation14], %s1259
        // Predicated region
        $region77: #{fcnet_forward.1} parent=47 // pred_check
          %p1261 = pneg %p197
        $region78: #{fcnet_forward.1} parent=47 // pred_check_branch
          %1263 = sbr.rel (%p1261) target = $region80
        $region79: #{fcnet_forward.1} parent=47 // pred_region
          %s1265 = ssub.s32 64, 64
          %1266 = vsyncadd %s1257, %s1265
          %s1267 = smul.addr %s27, 64
          %s1268 = scalar_lea.hbm %s7, %s1267
          %s1270 = sshll.u32 %s1260, 4
          %s1271 = int_to_ptr.vmem [resolvable:$true] %s1270
          %1273 = dma.vmem_to_hbm [thread:$0]  %s1271, 64, %s1268, %s1257
        $region80: #{fcnet_forward.1} parent=47 // pred_fallthru
          _
      $region48: #{fcnet_forward.1} parent=5 // pred_fallthru
        _
      %p1274 = scmp.le.s32.totalorder 2, %s22
      // Predicated region
      $region81: #{fcnet_forward.1} parent=5 // pred_check
        %p1275 = pneg %p1274
      $region82: #{fcnet_forward.1} parent=5 // pred_check_branch
        %1277 = sbr.rel (%p1275) target = $region84
      $region83: #{fcnet_forward.1} parent=5 // pred_region
        %s1278 = ssub.s32 %s22, 2
        // Predicated region
        $region85: #{fcnet_forward.1} parent=83 // pred_check
          %p1279 = pneg %p203
        $region86: #{fcnet_forward.1} parent=83 // pred_check_branch
          %1281 = sbr.rel (%p1279) target = $region88
        $region87: #{fcnet_forward.1} parent=83 // pred_region
          %s1282 = sand.u32 %s188, 1
          %s1283 = scalar_lea.sflag [#allocation4], %s1282
          %s1284 = sand.u32 %s188, 1
          %s1285 = smul.addr %s1284, 4
          %s1286 = scalar_lea.vmem [#allocation14], %s1285
          %1287 = dma.done %s1283, 64
        $region88: #{fcnet_forward.1} parent=83 // pred_fallthru
          _
      $region84: #{fcnet_forward.1} parent=5 // pred_fallthru
        _
    $region6: #{fcnet_forward.1} parent=1 // loop_footer
      %s26 = sadd.s32 1, %s22
    $region7: #{fcnet_forward.1} parent=1 // loop_footer_branch
      %21 = sbr.rel target = $region3
    $region8: #{fcnet_forward.1} parent=1 // loop_exit
      _
    %1288 = vsyncpa [#allocation3], 1
    %s1289 = scalar_lea.sflag [#allocation3], 1
    %1290 = vsyncpa %s1289, 1
    %1291 = vsyncpa [#allocation6], 1
    %1292 = vsyncpa [#allocation9], 1
    %1293 = vsyncpa [#allocation12], 1
    %1294 = vsyncpa [#allocation4], 1
    %s1295 = scalar_lea.sflag [#allocation4], 1
    %1296 = vsyncpa %s1295, 1

</llo_original>
